<compile_context>
chip_gen: v6e
topology: v6e:2x2x1
jax: 0.10.0
libtpu: 0.0.40
codegen_flags: <defaults>
</compile_context>

<pallas_src>
import functools

import jax
import jax.numpy as jnp
from jax.experimental import pallas as pl
from jax.experimental.pallas import tpu as pltpu


def _biaffine_kernel(x1_ref, x2_ref, w1_ref, out_ref, u_ref):
    # x1_ref: (tm, Dp)   augmented rows of input1 (bf16)
    # x2_ref: (tn, Dp)   augmented rows of input2 (bf16)
    # w1_ref: (O, Dp, Dp) augmented/fused bilinear weight (bf16)
    # out_ref: (O, tm, tn) f32   -- lane-dense (tn on the lane axis)
    # u_ref:   (O, tm, Dp) VMEM scratch, cached across the j grid axis
    O = out_ref.shape[0]
    j = pl.program_id(2)

    # Stage 1: u[o] = x1_tile @ w1_aug[o]   -- only when entering a new row
    # tile (j == 0); reused for all S//tn column tiles of that row tile.
    @pl.when(j == 0)
    def _():
        x1 = x1_ref[...]                                    # (tm, Dp)
        for o in range(O):                                  # O is small; static unroll
            u_ref[o, :, :] = jnp.dot(
                x1, w1_ref[o, :, :],
                preferred_element_type=jnp.float32,
            ).astype(u_ref.dtype)

    # Stage 2: out[o] = u[o] @ x2_tile^T  (contract over Dp, lane axis of both)
    x2 = x2_ref[...]                                        # (tn, Dp)
    for o in range(O):
        out_ref[o, :, :] = jax.lax.dot_general(
            u_ref[o, :, :], x2,
            dimension_numbers=(((1,), (1,)), ((), ())),
            preferred_element_type=jnp.float32,
        ).astype(out_ref.dtype)


def _pick_tile(s, tile):
    """Largest of (tile, s) that divides s; tile is a multiple of 128."""
    t = min(tile, s)
    if s % t != 0:
        t = s  # fallback: untiled along this axis (full-extent block is legal)
    return t


def biaffine_forward(input1, input2, w1, w2, *, tile_m=256, tile_n=256,
                     compute_dtype=jnp.bfloat16):
    """input1/input2: (B, S, D); w1: (D, O, D); w2: (2D+1, O). Returns (B,S,S,O) f32."""
    B, S, D = input1.shape
    O = w1.shape[1]
    assert w1.shape == (D, O, D)
    assert w2.shape == (2 * D + 1, O)

    # ---- fold w2 (logits2) into an augmented bilinear weight --------------
    # Augmented feature: x_aug = [x, 1, 0 ... 0]  of width Dp (lane-aligned).
    # w1_aug[o] = [[ w1[:,o,:]   w2a[:,o]  0 ]
    #              [ w2b[:,o]^T  bias[o]   0 ]
    #              [    0           0      0 ]]        shape (Dp, Dp)
    Dp = ((D + 1 + 127) // 128) * 128
    w1_aug = jnp.zeros((O, Dp, Dp), dtype=jnp.float32)
    w1_aug = w1_aug.at[:, :D, :D].set(jnp.transpose(w1, (1, 0, 2)))      # bilinear
    w1_aug = w1_aug.at[:, :D, D].set(jnp.transpose(w2[:D, :]))           # f1 @ w2a
    w1_aug = w1_aug.at[:, D, :D].set(jnp.transpose(w2[D:2 * D, :]))      # f2 @ w2b
    w1_aug = w1_aug.at[:, D, D].set(w2[2 * D, :])                        # bias
    w1_aug = w1_aug.astype(compute_dtype)

    ones = jnp.ones((B, S, 1), dtype=input1.dtype)
    zpad = jnp.zeros((B, S, Dp - D - 1), dtype=input1.dtype)
    x1_aug = jnp.concatenate([input1, ones, zpad], axis=-1).astype(compute_dtype)
    x2_aug = jnp.concatenate([input2, ones, zpad], axis=-1).astype(compute_dtype)

    # ---- tiling -----------------------------------------------------------
    # Output block is (O, tm, tn): lane-dense, ~1 MiB at tm=tn=256 / small O,
    # which (with double-buffered inputs and the resident w1_aug) fits well
    # inside v7x's 64 MiB VMEM as well as v5e/v6e.
    tm = _pick_tile(S, tile_m)
    tn = _pick_tile(S, tile_n)
    grid = (B, S // tm, S // tn)

    itemsize = jnp.dtype(compute_dtype).itemsize
    flops = 2 * B * S * Dp * Dp * O + 2 * B * S * S * Dp * O
    bytes_accessed = (x1_aug.size + x2_aug.size + w1_aug.size) * itemsize \
        + B * O * S * S * 4
    cost = pl.CostEstimate(flops=flops, transcendentals=0,
                           bytes_accessed=bytes_accessed)

    out_osst = pl.pallas_call(
        _biaffine_kernel,
        out_shape=jax.ShapeDtypeStruct((B, O, S, S), jnp.float32),
        grid_spec=pltpu.PrefetchScalarGridSpec(
            num_scalar_prefetch=0,
            grid=grid,
            in_specs=[
                pl.BlockSpec((None, tm, Dp), lambda b, i, j: (b, i, 0)),   # x1 rows
                pl.BlockSpec((None, tn, Dp), lambda b, i, j: (b, j, 0)),   # x2 rows
                pl.BlockSpec((O, Dp, Dp), lambda b, i, j: (0, 0, 0)),      # fused w1
            ],
            out_specs=pl.BlockSpec((None, O, tm, tn),
                                   lambda b, i, j: (b, 0, i, j)),
            scratch_shapes=[pltpu.VMEM((O, tm, Dp), compute_dtype)],       # cached u
        ),
        compiler_params=pltpu.CompilerParams(
            # b and i shard across TensorCores (megacore); j must stay
            # sequential ("arbitrary") so the u cache is valid.
            dimension_semantics=("parallel", "parallel", "arbitrary"),
            vmem_limit_bytes=48 * 1024 * 1024,
        ),
        cost_estimate=cost,
    )(x1_aug, x2_aug, w1_aug)

    # Final permute to the module's (B, S, S, O) layout happens in XLA.
    return jnp.transpose(out_osst, (0, 2, 3, 1))


def _reference(input1, input2, w1, w2):
    B, S, D = input1.shape
    f1 = jnp.broadcast_to(input1[:, :, None, :], (B, S, S, D))
    f2 = jnp.broadcast_to(input2[:, None, :, :], (B, S, S, D))
    concat = jnp.concatenate([f1, f2, jnp.ones_like(f1[..., :1])], axis=-1)
    logits1 = jnp.einsum('bxi,ioj,byj->bxyo', input1, w1, input2)
    logits2 = jnp.einsum('bxyk,ko->bxyo', concat, w2)
    return logits1 + logits2


if __name__ == "__main__":
    B, S, D, O = 2, 8, 32, 4

    key = jax.random.PRNGKey(0)
    k1, k2, k3, k4 = jax.random.split(key, 4)
    input1 = jax.random.normal(k1, (B, S, D), dtype=jnp.float32)
    input2 = jax.random.normal(k2, (B, S, D), dtype=jnp.float32)
    # Deterministic synthetic parameters (module's __init__ leaves them uninit).
    w1 = 0.1 * jax.random.normal(k3, (D, O, D), dtype=jnp.float32)
    w2 = 0.1 * jax.random.normal(k4, (2 * D + 1, O), dtype=jnp.float32)

    fwd = jax.jit(functools.partial(biaffine_forward))
    out = jax.block_until_ready(fwd(input1, input2, w1, w2))
    assert out.shape == (B, S, S, O)

    # The kernel runs its MXU matmuls in bf16 (f32 accumulation); validate
    # against the exact module math evaluated on the same bf16-rounded operands.
    rnd = lambda a: a.astype(jnp.bfloat16).astype(jnp.float32)
    ref = _reference(rnd(input1), rnd(input2), rnd(w1), rnd(w2))
    assert jnp.allclose(out, ref, atol=5e-2, rtol=2e-2), \
        float(jnp.max(jnp.abs(out - ref)))

    print("KERNEL_OK")
</pallas_src>

<mosaic_0001>
module attributes {stable_mosaic.version = 11 : i64} {
  func.func @_biaffine_kernel(%arg0: i32, %arg1: i32, %arg2: i32, %arg3: memref<1x8x128xbf16, #tpu.memory_space<vmem>>, %arg4: memref<1x8x128xbf16, #tpu.memory_space<vmem>>, %arg5: memref<4x128x128xbf16, #tpu.memory_space<vmem>>, %arg6: memref<1x4x8x8xf32, #tpu.memory_space<vmem>>, %arg7: memref<4x8x128xbf16, #tpu.memory_space<vmem>>) attributes {dimension_semantics = [#tpu.dimension_semantics<parallel>, #tpu.dimension_semantics<parallel>, #tpu.dimension_semantics<arbitrary>], iteration_bounds = array<i64: 2, 1, 1>, scalar_prefetch = 0 : i64, scratch_operands = 1 : i64, tpu.core_type = #tpu.core_type<tc>, window_params = [{transform_indices = @transform_0, window_bounds = array<i64: 1, 8, 128>}, {transform_indices = @transform_1, window_bounds = array<i64: 1, 8, 128>}, {pipeline_mode = #tpu.pipeline_mode<synchronous>, transform_indices = @transform_2, window_bounds = array<i64: 4, 128, 128>}, {transform_indices = @transform_3, window_bounds = array<i64: 1, 4, 8, 8>}]} {
    %c0_i32 = arith.constant 0 : i32
    %0 = arith.cmpi eq, %arg2, %c0_i32 : i32
    %1 = arith.extui %0 : i1 to i32
    %c0_i32_0 = arith.constant 0 : i32
    %2 = arith.cmpi ne, %1, %c0_i32_0 : i32
    scf.if %2 {
      %c0_31 = arith.constant 0 : index
      %c0_32 = arith.constant 0 : index
      %c0_33 = arith.constant 0 : index
      %29 = vector.load %arg3[%c0_31, %c0_32, %c0_33] : memref<1x8x128xbf16, #tpu.memory_space<vmem>>, vector<1x8x128xbf16>
      %30 = vector.shape_cast %29 : vector<1x8x128xbf16> to vector<8x128xbf16>
      %c0_34 = arith.constant 0 : index
      %c0_35 = arith.constant 0 : index
      %c0_36 = arith.constant 0 : index
      %31 = vector.load %arg5[%c0_34, %c0_35, %c0_36] : memref<4x128x128xbf16, #tpu.memory_space<vmem>>, vector<1x128x128xbf16>
      %32 = vector.shape_cast %31 : vector<1x128x128xbf16> to vector<128x128xbf16>
      %cst_37 = arith.constant dense<0.000000e+00> : vector<8x128xf32>
      %33 = tpu.matmul %30, %32, %cst_37 {dimension_numbers = #tpu.dot_dimension_numbers<[1], [0], [0], [1], [0, 0, 1, 1], [], []>} : vector<8x128xbf16>, vector<128x128xbf16>, vector<8x128xf32> -> vector<8x128xf32>
      %34 = arith.truncf %33 : vector<8x128xf32> to vector<8x128xbf16>
      %c0_38 = arith.constant 0 : index
      %c0_39 = arith.constant 0 : index
      %c0_40 = arith.constant 0 : index
      %35 = vector.load %arg7[%c0_38, %c0_39, %c0_40] : memref<4x8x128xbf16, #tpu.memory_space<vmem>>, vector<1x8x128xbf16>
      %36 = vector.shape_cast %35 : vector<1x8x128xbf16> to vector<8x128xbf16>
      %37 = vector.shape_cast %34 : vector<8x128xbf16> to vector<1x8x128xbf16>
      tpu.vector_store %arg7[%c0_38, %c0_39, %c0_40], %37 {strides = array<i32>} : memref<4x8x128xbf16, #tpu.memory_space<vmem>>, vector<1x8x128xbf16>,
      %c1_41 = arith.constant 1 : index
      %c0_42 = arith.constant 0 : index
      %c0_43 = arith.constant 0 : index
      %38 = vector.load %arg5[%c1_41, %c0_42, %c0_43] : memref<4x128x128xbf16, #tpu.memory_space<vmem>>, vector<1x128x128xbf16>
      %39 = vector.shape_cast %38 : vector<1x128x128xbf16> to vector<128x128xbf16>
      %cst_44 = arith.constant dense<0.000000e+00> : vector<8x128xf32>
      %40 = tpu.matmul %30, %39, %cst_44 {dimension_numbers = #tpu.dot_dimension_numbers<[1], [0], [0], [1], [0, 0, 1, 1], [], []>} : vector<8x128xbf16>, vector<128x128xbf16>, vector<8x128xf32> -> vector<8x128xf32>
      %41 = arith.truncf %40 : vector<8x128xf32> to vector<8x128xbf16>
      %c1_45 = arith.constant 1 : index
      %c0_46 = arith.constant 0 : index
      %c0_47 = arith.constant 0 : index
      %42 = vector.load %arg7[%c1_45, %c0_46, %c0_47] : memref<4x8x128xbf16, #tpu.memory_space<vmem>>, vector<1x8x128xbf16>
      %43 = vector.shape_cast %42 : vector<1x8x128xbf16> to vector<8x128xbf16>
      %44 = vector.shape_cast %41 : vector<8x128xbf16> to vector<1x8x128xbf16>
      tpu.vector_store %arg7[%c1_45, %c0_46, %c0_47], %44 {strides = array<i32>} : memref<4x8x128xbf16, #tpu.memory_space<vmem>>, vector<1x8x128xbf16>,
      %c2_48 = arith.constant 2 : index
      %c0_49 = arith.constant 0 : index
      %c0_50 = arith.constant 0 : index
      %45 = vector.load %arg5[%c2_48, %c0_49, %c0_50] : memref<4x128x128xbf16, #tpu.memory_space<vmem>>, vector<1x128x128xbf16>
      %46 = vector.shape_cast %45 : vector<1x128x128xbf16> to vector<128x128xbf16>
      %cst_51 = arith.constant dense<0.000000e+00> : vector<8x128xf32>
      %47 = tpu.matmul %30, %46, %cst_51 {dimension_numbers = #tpu.dot_dimension_numbers<[1], [0], [0], [1], [0, 0, 1, 1], [], []>} : vector<8x128xbf16>, vector<128x128xbf16>, vector<8x128xf32> -> vector<8x128xf32>
      %48 = arith.truncf %47 : vector<8x128xf32> to vector<8x128xbf16>
      %c2_52 = arith.constant 2 : index
      %c0_53 = arith.constant 0 : index
      %c0_54 = arith.constant 0 : index
      %49 = vector.load %arg7[%c2_52, %c0_53, %c0_54] : memref<4x8x128xbf16, #tpu.memory_space<vmem>>, vector<1x8x128xbf16>
      %50 = vector.shape_cast %49 : vector<1x8x128xbf16> to vector<8x128xbf16>
      %51 = vector.shape_cast %48 : vector<8x128xbf16> to vector<1x8x128xbf16>
      tpu.vector_store %arg7[%c2_52, %c0_53, %c0_54], %51 {strides = array<i32>} : memref<4x8x128xbf16, #tpu.memory_space<vmem>>, vector<1x8x128xbf16>,
      %c3_55 = arith.constant 3 : index
      %c0_56 = arith.constant 0 : index
      %c0_57 = arith.constant 0 : index
      %52 = vector.load %arg5[%c3_55, %c0_56, %c0_57] : memref<4x128x128xbf16, #tpu.memory_space<vmem>>, vector<1x128x128xbf16>
      %53 = vector.shape_cast %52 : vector<1x128x128xbf16> to vector<128x128xbf16>
      %cst_58 = arith.constant dense<0.000000e+00> : vector<8x128xf32>
      %54 = tpu.matmul %30, %53, %cst_58 {dimension_numbers = #tpu.dot_dimension_numbers<[1], [0], [0], [1], [0, 0, 1, 1], [], []>} : vector<8x128xbf16>, vector<128x128xbf16>, vector<8x128xf32> -> vector<8x128xf32>
      %55 = arith.truncf %54 : vector<8x128xf32> to vector<8x128xbf16>
      %c3_59 = arith.constant 3 : index
      %c0_60 = arith.constant 0 : index
      %c0_61 = arith.constant 0 : index
      %56 = vector.load %arg7[%c3_59, %c0_60, %c0_61] : memref<4x8x128xbf16, #tpu.memory_space<vmem>>, vector<1x8x128xbf16>
      %57 = vector.shape_cast %56 : vector<1x8x128xbf16> to vector<8x128xbf16>
      %58 = vector.shape_cast %55 : vector<8x128xbf16> to vector<1x8x128xbf16>
      tpu.vector_store %arg7[%c3_59, %c0_60, %c0_61], %58 {strides = array<i32>} : memref<4x8x128xbf16, #tpu.memory_space<vmem>>, vector<1x8x128xbf16>,
    } else {
    }
    %c0 = arith.constant 0 : index
    %c0_1 = arith.constant 0 : index
    %c0_2 = arith.constant 0 : index
    %3 = vector.load %arg4[%c0, %c0_1, %c0_2] : memref<1x8x128xbf16, #tpu.memory_space<vmem>>, vector<1x8x128xbf16>
    %4 = vector.shape_cast %3 : vector<1x8x128xbf16> to vector<8x128xbf16>
    %c0_3 = arith.constant 0 : index
    %c0_4 = arith.constant 0 : index
    %c0_5 = arith.constant 0 : index
    %5 = vector.load %arg7[%c0_3, %c0_4, %c0_5] : memref<4x8x128xbf16, #tpu.memory_space<vmem>>, vector<1x8x128xbf16>
    %6 = vector.shape_cast %5 : vector<1x8x128xbf16> to vector<8x128xbf16>
    %cst = arith.constant dense<0.000000e+00> : vector<8x8xf32>
    %7 = tpu.matmul %6, %4, %cst {dimension_numbers = #tpu.dot_dimension_numbers<[1], [1], [0], [0], [0, 0, 1, 0], [], []>} : vector<8x128xbf16>, vector<8x128xbf16>, vector<8x8xf32> -> vector<8x8xf32>
    %c0_6 = arith.constant 0 : index
    %c0_7 = arith.constant 0 : index
    %c0_8 = arith.constant 0 : index
    %c0_9 = arith.constant 0 : index
    %8 = vector.load %arg6[%c0_6, %c0_7, %c0_8, %c0_9] : memref<1x4x8x8xf32, #tpu.memory_space<vmem>>, vector<1x1x8x8xf32>
    %9 = vector.shape_cast %8 : vector<1x1x8x8xf32> to vector<8x8xf32>
    %10 = vector.shape_cast %7 : vector<8x8xf32> to vector<1x1x8x8xf32>
    tpu.vector_store %arg6[%c0_6, %c0_7, %c0_8, %c0_9], %10 {strides = array<i32>} : memref<1x4x8x8xf32, #tpu.memory_space<vmem>>, vector<1x1x8x8xf32>,
    %c1 = arith.constant 1 : index
    %c0_10 = arith.constant 0 : index
    %c0_11 = arith.constant 0 : index
    %11 = vector.load %arg7[%c1, %c0_10, %c0_11] : memref<4x8x128xbf16, #tpu.memory_space<vmem>>, vector<1x8x128xbf16>
    %12 = vector.shape_cast %11 : vector<1x8x128xbf16> to vector<8x128xbf16>
    %cst_12 = arith.constant dense<0.000000e+00> : vector<8x8xf32>
    %13 = tpu.matmul %12, %4, %cst_12 {dimension_numbers = #tpu.dot_dimension_numbers<[1], [1], [0], [0], [0, 0, 1, 0], [], []>} : vector<8x128xbf16>, vector<8x128xbf16>, vector<8x8xf32> -> vector<8x8xf32>
    %c0_13 = arith.constant 0 : index
    %c1_14 = arith.constant 1 : index
    %c0_15 = arith.constant 0 : index
    %c0_16 = arith.constant 0 : index
    %14 = vector.load %arg6[%c0_13, %c1_14, %c0_15, %c0_16] : memref<1x4x8x8xf32, #tpu.memory_space<vmem>>, vector<1x1x8x8xf32>
    %15 = vector.shape_cast %14 : vector<1x1x8x8xf32> to vector<8x8xf32>
    %16 = vector.shape_cast %13 : vector<8x8xf32> to vector<1x1x8x8xf32>
    tpu.vector_store %arg6[%c0_13, %c1_14, %c0_15, %c0_16], %16 {strides = array<i32>} : memref<1x4x8x8xf32, #tpu.memory_space<vmem>>, vector<1x1x8x8xf32>,
    %c2 = arith.constant 2 : index
    %c0_17 = arith.constant 0 : index
    %c0_18 = arith.constant 0 : index
    %17 = vector.load %arg7[%c2, %c0_17, %c0_18] : memref<4x8x128xbf16, #tpu.memory_space<vmem>>, vector<1x8x128xbf16>
    %18 = vector.shape_cast %17 : vector<1x8x128xbf16> to vector<8x128xbf16>
    %cst_19 = arith.constant dense<0.000000e+00> : vector<8x8xf32>
    %19 = tpu.matmul %18, %4, %cst_19 {dimension_numbers = #tpu.dot_dimension_numbers<[1], [1], [0], [0], [0, 0, 1, 0], [], []>} : vector<8x128xbf16>, vector<8x128xbf16>, vector<8x8xf32> -> vector<8x8xf32>
    %c0_20 = arith.constant 0 : index
    %c2_21 = arith.constant 2 : index
    %c0_22 = arith.constant 0 : index
    %c0_23 = arith.constant 0 : index
    %20 = vector.load %arg6[%c0_20, %c2_21, %c0_22, %c0_23] : memref<1x4x8x8xf32, #tpu.memory_space<vmem>>, vector<1x1x8x8xf32>
    %21 = vector.shape_cast %20 : vector<1x1x8x8xf32> to vector<8x8xf32>
    %22 = vector.shape_cast %19 : vector<8x8xf32> to vector<1x1x8x8xf32>
    tpu.vector_store %arg6[%c0_20, %c2_21, %c0_22, %c0_23], %22 {strides = array<i32>} : memref<1x4x8x8xf32, #tpu.memory_space<vmem>>, vector<1x1x8x8xf32>,
    %c3 = arith.constant 3 : index
    %c0_24 = arith.constant 0 : index
    %c0_25 = arith.constant 0 : index
    %23 = vector.load %arg7[%c3, %c0_24, %c0_25] : memref<4x8x128xbf16, #tpu.memory_space<vmem>>, vector<1x8x128xbf16>
    %24 = vector.shape_cast %23 : vector<1x8x128xbf16> to vector<8x128xbf16>
    %cst_26 = arith.constant dense<0.000000e+00> : vector<8x8xf32>
    %25 = tpu.matmul %24, %4, %cst_26 {dimension_numbers = #tpu.dot_dimension_numbers<[1], [1], [0], [0], [0, 0, 1, 0], [], []>} : vector<8x128xbf16>, vector<8x128xbf16>, vector<8x8xf32> -> vector<8x8xf32>
    %c0_27 = arith.constant 0 : index
    %c3_28 = arith.constant 3 : index
    %c0_29 = arith.constant 0 : index
    %c0_30 = arith.constant 0 : index
    %26 = vector.load %arg6[%c0_27, %c3_28, %c0_29, %c0_30] : memref<1x4x8x8xf32, #tpu.memory_space<vmem>>, vector<1x1x8x8xf32>
    %27 = vector.shape_cast %26 : vector<1x1x8x8xf32> to vector<8x8xf32>
    %28 = vector.shape_cast %25 : vector<8x8xf32> to vector<1x1x8x8xf32>
    tpu.vector_store %arg6[%c0_27, %c3_28, %c0_29, %c0_30], %28 {strides = array<i32>} : memref<1x4x8x8xf32, #tpu.memory_space<vmem>>, vector<1x1x8x8xf32>,
    return
  }
  func.func @transform_0(%arg0: i32, %arg1: i32, %arg2: i32) -> (i32, i32, i32) {
    %c0_i32 = arith.constant 0 : i32
    %c0_i32_0 = arith.constant 0 : i32
    return %arg0, %arg1, %c0_i32 : i32, i32, i32
  }
  func.func @transform_1(%arg0: i32, %arg1: i32, %arg2: i32) -> (i32, i32, i32) {
    %c0_i32 = arith.constant 0 : i32
    %c0_i32_0 = arith.constant 0 : i32
    return %arg0, %arg2, %c0_i32 : i32, i32, i32
  }
  func.func @transform_2(%arg0: i32, %arg1: i32, %arg2: i32) -> (i32, i32, i32) {
    %c0_i32 = arith.constant 0 : i32
    %c0_i32_0 = arith.constant 0 : i32
    %c0_i32_1 = arith.constant 0 : i32
    %c0_i32_2 = arith.constant 0 : i32
    return %c0_i32, %c0_i32_0, %c0_i32_1 : i32, i32, i32
  }
  func.func @transform_3(%arg0: i32, %arg1: i32, %arg2: i32) -> (i32, i32, i32, i32) {
    %c0_i32 = arith.constant 0 : i32
    %c0_i32_0 = arith.constant 0 : i32
    return %arg0, %c0_i32, %arg1, %arg2 : i32, i32, i32, i32
  }
}

</mosaic_0001>

<llo_original>
// kernel: biaffine_forward.1
$region0: #{biaffine_forward.1}
  #allocation0 [shape = 'u32[]', space=smem, size = 0x4, offset = 0x4, fixed_abs, tag = 'smem constant byte address 0x4 - core index']
  #allocation1 [shape = 'u32[144,128]{1,0:T(1,128)}', space=vmem, size = 0x12000, scoped, tag = 'internal scratch']
  #allocation2 [shape = 'bf16[4,8,128]{2,1,0:T(8,128)(2,1)}', space=vmem, size = 0x2000, scoped, tag = 'scratch operand']
  %s0 = inlined_call_operand.vmem [shape: bf16[2,8,128], index: 0, kind: input, shape index: {}]
  %s1 = inlined_call_operand.vmem [shape: bf16[2,8,128], index: 1, kind: input, shape index: {}]
  %s2 = inlined_call_operand.vmem [shape: bf16[4,128,128], index: 2, kind: input, shape index: {}]
  %s3 = inlined_call_operand.vmem [shape: f32[2,4,8,8], index: 3, kind: output, shape index: {}]
  %s4 = sld [smem:[#allocation0]]
  $region49: #{biaffine_forward.1} parent=0
    _
  %s6 = ssub.s32 1, %s4
  %s7 = scalar_select 0, %s6, %s4
  loop: start=0, step=1, limit=4
  $region2: #{biaffine_forward.1} parent=0 // loop_pre_header
    _
  $region3: #{biaffine_forward.1} parent=0 // loop_header
    %s9 = sphi 0, %s13
    %p10 = scmp.ge.s32.totalorder %s9, 4
    %s16 = sphi 0, %s35
    %s17 = sphi 0, %s31
    %s18 = sphi 0, %s27
    %s19 = sphi 0, %s16
    %s20 = sphi 0, %s17
    %s21 = sphi 0, %s18
    %s22 = sphi 0, %s19
    %s23 = sphi 0, %s20
    %s24 = sphi 0, %s21
    %s40 = sphi 0, %s42
    %s43 = sphi 0, %s40
    %s44 = sphi 0, %s43
    %s60 = sphi 0, %s44
    %s68 = sphi 0, %s70
    %s71 = sphi 0, %s68
    %s72 = sphi 0, %s71
    %s88 = sphi 0, %s72
    %s92 = sphi 0, %s92
    %s94 = sphi 0, %s92
    %s95 = sphi 0, %s94
    %s109 = sphi 0, %s95
    %s119 = sphi 0, %s121
    %s122 = sphi 0, %s119
    %s123 = sphi 0, %s122
    %s139 = sphi 0, %s123
  $region4: #{biaffine_forward.1} parent=0 // loop_header_branch
    %12 = sbr.rel (%p10) target = $region8
  $region5: #{biaffine_forward.1} parent=0 // loop_body
    %s14 = ssub.s32 %s9, 1
    %s15 = ssub.s32 %s9, 2
    %s25 = sadd.s32 1, %s18
    %p26 = scmp.ge.s32.totalorder %s25, 1
    %s27 = scalar_select %p26, 0, %s25
    %s28 = sadd.s32 1, %s17
    %s29 = scalar_select %p26, %s28, %s17
    %p30 = scmp.ge.s32.totalorder %s29, 1
    %s31 = scalar_select %p30, 0, %s29
    %s32 = sadd.s32 1, %s16
    %s33 = scalar_select %p30, %s32, %s16
    %p34 = scmp.ge.s32.totalorder %s33, 2
    %s35 = scalar_select %p34, 0, %s33
    %s36 = ssub.s32 %s16, %s35
    %s37 = ssub.s32 %s17, %s31
    %s38 = sor.u32 %s36, %s37
    %p39 = scmp.eq.s32.totalorder %s38, 0
    %s41 = sadd.s32 %s40, 1
    %s42 = scalar_select %p39, %s40, %s41
    %p45 = pneg %p39
    %p46 = scmp.eq.s32.totalorder %s9, 1
    %p47 = por %p45, %p46
    %p48 = scmp.ne.s32.totalorder %s40, %s43
    %p49 = scmp.eq.s32.totalorder %s9, 0
    %p50 = por %p48, %p49
    %p51 = scmp.ne.s32.totalorder %s40, %s43
    %p52 = scmp.eq.s32.totalorder %s14, 1
    %p53 = por %p51, %p52
    %p54 = scmp.ne.s32.totalorder %s43, %s44
    %p55 = scmp.eq.s32.totalorder %s14, 0
    %p56 = por %p54, %p55
    %p57 = scmp.ne.s32.totalorder %s43, %s44
    %p58 = scmp.eq.s32.totalorder %s15, 1
    %p59 = por %p57, %p58
    %p61 = scmp.ne.s32.totalorder %s44, %s60
    %p62 = scmp.eq.s32.totalorder %s15, 0
    %p63 = por %p61, %p62
    %s64 = ssub.s32 %s16, %s35
    %s65 = ssub.s32 %s18, %s27
    %s66 = sor.u32 %s64, %s65
    %p67 = scmp.eq.s32.totalorder %s66, 0
    %s69 = sadd.s32 %s68, 1
    %s70 = scalar_select %p67, %s68, %s69
    %p73 = pneg %p67
    %p74 = scmp.eq.s32.totalorder %s9, 1
    %p75 = por %p73, %p74
    %p76 = scmp.ne.s32.totalorder %s68, %s71
    %p77 = scmp.eq.s32.totalorder %s9, 0
    %p78 = por %p76, %p77
    %p79 = scmp.ne.s32.totalorder %s68, %s71
    %p80 = scmp.eq.s32.totalorder %s14, 1
    %p81 = por %p79, %p80
    %p82 = scmp.ne.s32.totalorder %s71, %s72
    %p83 = scmp.eq.s32.totalorder %s14, 0
    %p84 = por %p82, %p83
    %p85 = scmp.ne.s32.totalorder %s71, %s72
    %p86 = scmp.eq.s32.totalorder %s15, 1
    %p87 = por %p85, %p86
    %p89 = scmp.ne.s32.totalorder %s72, %s88
    %p90 = scmp.eq.s32.totalorder %s15, 0
    %p91 = por %p89, %p90
    %s93 = sadd.s32 %s92, 1
    %p96 = scmp.eq.s32.totalorder %s9, 1
    %p97 = scmp.ne.s32.totalorder %s92, %s94
    %p98 = scmp.eq.s32.totalorder %s9, 0
    %p99 = por %p97, %p98
    %p100 = scmp.ne.s32.totalorder %s92, %s94
    %p101 = scmp.eq.s32.totalorder %s14, 1
    %p102 = por %p100, %p101
    %p103 = scmp.ne.s32.totalorder %s94, %s95
    %p104 = scmp.eq.s32.totalorder %s14, 0
    %p105 = por %p103, %p104
    %p106 = scmp.ne.s32.totalorder %s94, %s95
    %p107 = scmp.eq.s32.totalorder %s15, 1
    %p108 = por %p106, %p107
    %p110 = scmp.ne.s32.totalorder %s95, %s109
    %p111 = scmp.eq.s32.totalorder %s15, 0
    %p112 = por %p110, %p111
    %s113 = ssub.s32 %s16, %s35
    %s114 = ssub.s32 %s17, %s31
    %s115 = sor.u32 %s113, %s114
    %s116 = ssub.s32 %s18, %s27
    %s117 = sor.u32 %s115, %s116
    %p118 = scmp.eq.s32.totalorder %s117, 0
    %s120 = sadd.s32 %s119, 1
    %s121 = scalar_select %p118, %s119, %s120
    %p124 = pneg %p118
    %p125 = scmp.eq.s32.totalorder %s9, 1
    %p126 = por %p124, %p125
    %p127 = scmp.ne.s32.totalorder %s119, %s122
    %p128 = scmp.eq.s32.totalorder %s9, 0
    %p129 = por %p127, %p128
    %p130 = scmp.ne.s32.totalorder %s119, %s122
    %p131 = scmp.eq.s32.totalorder %s14, 1
    %p132 = por %p130, %p131
    %p133 = scmp.ne.s32.totalorder %s122, %s123
    %p134 = scmp.eq.s32.totalorder %s14, 0
    %p135 = por %p133, %p134
    %p136 = scmp.ne.s32.totalorder %s122, %s123
    %p137 = scmp.eq.s32.totalorder %s15, 1
    %p138 = por %p136, %p137
    %p140 = scmp.ne.s32.totalorder %s123, %s139
    %p141 = scmp.eq.s32.totalorder %s15, 0
    %p142 = por %p140, %p141
    %p143 = scmp.le.s32.totalorder 1, %s9
    %p144 = scmp.lt.s32.totalorder %s9, 3
    %p145 = pnand %p143, %p144
    %p146 = pneg %p145
    // Predicated region
    $region9: #{biaffine_forward.1} parent=5 // pred_check
      _
    $region10: #{biaffine_forward.1} parent=5 // pred_check_branch
      %148 = sbr.rel (%p145) target = $region12
    $region11: #{biaffine_forward.1} parent=5 // pred_region
      %s149 = ssub.s32 %s9, 1
      // Predicated region
      $region13: #{biaffine_forward.1} parent=11 // pred_check
        %p150 = pneg %p105
      $region14: #{biaffine_forward.1} parent=11 // pred_check_branch
        %152 = sbr.rel (%p150) target = $region16
      $region15: #{biaffine_forward.1} parent=11 // pred_region
        _
      $region16: #{biaffine_forward.1} parent=11 // pred_fallthru
        _
    $region12: #{biaffine_forward.1} parent=5 // pred_fallthru
      _
    %p153 = scmp.lt.s32.totalorder %s9, 2
    // Predicated region
    $region17: #{biaffine_forward.1} parent=5 // pred_check
      %p154 = pneg %p153
    $region18: #{biaffine_forward.1} parent=5 // pred_check_branch
      %156 = sbr.rel (%p154) target = $region20
    $region19: #{biaffine_forward.1} parent=5 // pred_region
      // Predicated region
      $region21: #{biaffine_forward.1} parent=19 // pred_check
        %p157 = pneg %p50
      $region22: #{biaffine_forward.1} parent=19 // pred_check_branch
        %159 = sbr.rel (%p157) target = $region24
      $region23: #{biaffine_forward.1} parent=19 // pred_region
        %p160 = scmp.lt.s32.totalorder %s16, 1
        %s161 = scalar_select %p160, %s16, 1
        %p162 = scmp.lt.s32.totalorder %s17, 0
        %s163 = scalar_select %p162, %s17, 0
        %s164 = sadd.s32 %s163, %s161
        %s165 = smul.addr %s164, 4
        %s166 = scalar_lea.vmem %s0, %s165
      $region24: #{biaffine_forward.1} parent=19 // pred_fallthru
        _
      // Predicated region
      $region25: #{biaffine_forward.1} parent=19 // pred_check
        %p167 = pneg %p78
      $region26: #{biaffine_forward.1} parent=19 // pred_check_branch
        %169 = sbr.rel (%p167) target = $region28
      $region27: #{biaffine_forward.1} parent=19 // pred_region
        %p170 = scmp.lt.s32.totalorder %s16, 1
        %s171 = scalar_select %p170, %s16, 1
        %p172 = scmp.lt.s32.totalorder %s18, 0
        %s173 = scalar_select %p172, %s18, 0
        %s174 = sadd.s32 %s173, %s171
        %s175 = smul.addr %s174, 4
        %s176 = scalar_lea.vmem %s1, %s175
      $region28: #{biaffine_forward.1} parent=19 // pred_fallthru
        _
    $region20: #{biaffine_forward.1} parent=5 // pred_fallthru
      _
    %p177 = scmp.le.s32.totalorder 1, %s9
    %p178 = scmp.lt.s32.totalorder %s9, 3
    %p179 = pnand %p177, %p178
    %p180 = pneg %p179
    // Predicated region
    $region29: #{biaffine_forward.1} parent=5 // pred_check
      _
    $region30: #{biaffine_forward.1} parent=5 // pred_check_branch
      %182 = sbr.rel (%p179) target = $region32
    $region31: #{biaffine_forward.1} parent=5 // pred_region
      %s183 = ssub.s32 %s9, 1
      %p184 = scmp.lt.s32.totalorder %s19, 1
      %s185 = scalar_select %p184, %s19, 1
      %p186 = scmp.lt.s32.totalorder %s20, 0
      %s187 = scalar_select %p186, %s20, 0
      %s188 = sadd.s32 %s187, %s185
      %s189 = smul.addr %s188, 4
      %s190 = scalar_lea.vmem %s0, %s189
      %p191 = pneg %p56
      %p192 = pneg %p53
      %p193 = scmp.lt.s32.totalorder %s19, 1
      %s194 = scalar_select %p193, %s19, 1
      %p195 = scmp.lt.s32.totalorder %s21, 0
      %s196 = scalar_select %p195, %s21, 0
      %s197 = sadd.s32 %s196, %s194
      %s198 = smul.addr %s197, 4
      %s199 = scalar_lea.vmem %s1, %s198
      %p200 = pneg %p84
      %p201 = pneg %p81
      %p202 = pneg %p105
      %p203 = pneg %p102
      %p204 = pneg %p135
      %p205 = pneg %p132
      %p206 = scmp.lt.s32.totalorder %s19, 1
      %s207 = scalar_select %p206, %s19, 1
      %p208 = scmp.lt.s32.totalorder %s20, 0
      %s209 = scalar_select %p208, %s20, 0
      %p210 = scmp.lt.s32.totalorder %s21, 0
      %s211 = scalar_select %p210, %s21, 0
      %s212 = sadd.s32 %s211, %s209
      %s213 = smul.addr %s207, 4
      %s214 = sadd.s32 %s212, %s213
      %s215 = smul.addr %s214, 8
      %s216 = scalar_lea.vmem %s3, %s215
      %p217 = scmp.lt.s32.totalorder %s19, 1
      %s218 = scalar_select %p217, %s19, 1
      %p219 = scmp.lt.s32.totalorder %s20, 0
      %s220 = scalar_select %p219, %s20, 0
      %s221 = sadd.s32 %s220, %s218
      %s222 = smul.addr %s221, 4
      %s223 = scalar_lea.vmem %s0, %s222
      %p224 = scmp.lt.s32.totalorder %s19, 1
      %s225 = scalar_select %p224, %s19, 1
      %p226 = scmp.lt.s32.totalorder %s21, 0
      %s227 = scalar_select %p226, %s21, 0
      %s228 = sadd.s32 %s227, %s225
      %s229 = smul.addr %s228, 4
      %s230 = scalar_lea.vmem %s1, %s229
      %p231 = scmp.lt.s32.totalorder %s19, 1
      %s232 = scalar_select %p231, %s19, 1
      %p233 = scmp.lt.s32.totalorder %s20, 0
      %s234 = scalar_select %p233, %s20, 0
      %p235 = scmp.lt.s32.totalorder %s21, 0
      %s236 = scalar_select %p235, %s21, 0
      %s237 = sadd.s32 %s236, %s234
      %s238 = smul.addr %s232, 4
      %s239 = sadd.s32 %s237, %s238
      %s240 = smul.addr %s239, 8
      %s241 = scalar_lea.vmem %s3, %s240
      %p243 = scmp.eq.s32.totalorder %s21, 0
      // Predicated region
      $region33: #{biaffine_forward.1} parent=31 // pred_check
        %p244 = pneg %p243
      $region34: #{biaffine_forward.1} parent=31 // pred_check_branch
        %246 = sbr.rel (%p244) target = $region36
      $region35: #{biaffine_forward.1} parent=31 // pred_region
        %v247 = vld [vmem:[%s223] sm:$0xf]
        %v248 = vld [vmem:[%s2] sm:$0xf]
        %v249 = vld [vmem:[%s2 + $0x4] sm:$0xf]
        %v250 = vld [vmem:[%s2 + $0x8] sm:$0xf]
        %v251 = vld [vmem:[%s2 + $0xc] sm:$0xf]
        %v252 = vld [vmem:[%s2 + $0x10] sm:$0xf]
        %v253 = vld [vmem:[%s2 + $0x14] sm:$0xf]
        %v254 = vld [vmem:[%s2 + $0x18] sm:$0xf]
        %v255 = vld [vmem:[%s2 + $0x1c] sm:$0xf]
        %v256 = vld [vmem:[%s2 + $0x20] sm:$0xf]
        %v257 = vld [vmem:[%s2 + $0x24] sm:$0xf]
        %v258 = vld [vmem:[%s2 + $0x28] sm:$0xf]
        %v259 = vld [vmem:[%s2 + $0x2c] sm:$0xf]
        %v260 = vld [vmem:[%s2 + $0x30] sm:$0xf]
        %v261 = vld [vmem:[%s2 + $0x34] sm:$0xf]
        %v262 = vld [vmem:[%s2 + $0x38] sm:$0xf]
        %v263 = vld [vmem:[%s2 + $0x3c] sm:$0xf]
        %v280 = vunpack.c.l.b16 %v248
        %v281 = vunpack.c.l.b16 %v249
        %v282 = vunpack.c.l.b16 %v250
        %v283 = vunpack.c.l.b16 %v251
        %v284 = vunpack.c.l.b16 %v252
        %v285 = vunpack.c.l.b16 %v253
        %v286 = vunpack.c.l.b16 %v254
        %v287 = vunpack.c.l.b16 %v255
        %v288 = vunpack.c.l.b16 %v256
        %v289 = vunpack.c.l.b16 %v257
        %v290 = vunpack.c.l.b16 %v258
        %v291 = vunpack.c.l.b16 %v259
        %v292 = vunpack.c.l.b16 %v260
        %v293 = vunpack.c.l.b16 %v261
        %v294 = vunpack.c.l.b16 %v262
        %v295 = vunpack.c.l.b16 %v263
        %v296 = vpack.c.b16 %v281, %v280
        %v297 = vpack.c.b16 %v283, %v282
        %v298 = vpack.c.b16 %v285, %v284
        %v299 = vpack.c.b16 %v287, %v286
        %v300 = vpack.c.b16 %v289, %v288
        %v301 = vpack.c.b16 %v291, %v290
        %v302 = vpack.c.b16 %v293, %v292
        %v303 = vpack.c.b16 %v295, %v294
        %312 = vmatprep.subr.bf16.mxu0 0
        %313 = vmatpush1.bf16.msra.mxu0 %v303
        %314 = vmatprep.subr.bf16.mxu0 0
        %315 = vmatpush1.bf16.msra.mxu0 %v302
        %316 = vmatprep.subr.bf16.mxu0 0
        %317 = vmatpush1.bf16.msra.mxu0 %v301
        %318 = vmatprep.subr.bf16.mxu0 0
        %319 = vmatpush1.bf16.msra.mxu0 %v300
        %320 = vmatprep.subr.bf16.mxu0 0
        %321 = vmatpush1.bf16.msra.mxu0 %v299
        %322 = vmatprep.subr.bf16.mxu0 0
        %323 = vmatpush1.bf16.msra.mxu0 %v298
        %324 = vmatprep.subr.bf16.mxu0 0
        %325 = vmatpush1.bf16.msra.mxu0 %v297
        %326 = vmatprep.subr.bf16.mxu0 0
        %327 = vmatpush1.bf16.msra.mxu0 %v296
        %328 = vmatprep.subr.bf16.mxu0 0
        %329 = vmatpush2.bf16.msra.mxu0 0
        %330 = vmatprep.subr.bf16.mxu0 0
        %331 = vmatpush2.bf16.msra.mxu0 0
        %332 = vmatprep.subr.bf16.mxu0 0
        %333 = vmatpush2.bf16.msra.mxu0 0
        %334 = vmatprep.subr.bf16.mxu0 0
        %335 = vmatpush2.bf16.msra.mxu0 0
        %336 = vmatprep.subr.bf16.mxu0 0
        %337 = vmatpush2.bf16.msra.mxu0 0
        %338 = vmatprep.subr.bf16.mxu0 0
        %339 = vmatpush2.bf16.msra.mxu0 0
        %340 = vmatprep.subr.bf16.mxu0 0
        %341 = vmatpush2.bf16.msra.mxu0 0
        %342 = vmatprep.subr.bf16.mxu0 0
        %343 = vmatpush2.bf16.msra.mxu0 0
        %344 = vmatprep.mubr.bf16.mxu0 0
        %345 = vmatmul.mubr.bf16.gmra.mxu0 %v247
        %v346 = vpop.f32.mrf.mxu0
        %v347 = vadd.f32 0.0, %v346
        %v348 = vpop.f32.mrf.mxu0
        %v349 = vpop.f32.mrf.mxu0
        %v350 = vpop.f32.mrf.mxu0
        %351 = vdwg.mxu0
        %v352 = vpack.c.bf16 %v347, %v347
        %353 = vst [vmem:[#allocation2] sm:$0xf] %v352
        %s354 = scalar_lea.vmem %s2, 64
        %v355 = vld [vmem:[%s354] sm:$0xf]
        %v356 = vld [vmem:[%s354 + $0x4] sm:$0xf]
        %v357 = vld [vmem:[%s354 + $0x8] sm:$0xf]
        %v358 = vld [vmem:[%s354 + $0xc] sm:$0xf]
        %v359 = vld [vmem:[%s354 + $0x10] sm:$0xf]
        %v360 = vld [vmem:[%s354 + $0x14] sm:$0xf]
        %v361 = vld [vmem:[%s354 + $0x18] sm:$0xf]
        %v362 = vld [vmem:[%s354 + $0x1c] sm:$0xf]
        %v363 = vld [vmem:[%s354 + $0x20] sm:$0xf]
        %v364 = vld [vmem:[%s354 + $0x24] sm:$0xf]
        %v365 = vld [vmem:[%s354 + $0x28] sm:$0xf]
        %v366 = vld [vmem:[%s354 + $0x2c] sm:$0xf]
        %v367 = vld [vmem:[%s354 + $0x30] sm:$0xf]
        %v368 = vld [vmem:[%s354 + $0x34] sm:$0xf]
        %v369 = vld [vmem:[%s354 + $0x38] sm:$0xf]
        %v370 = vld [vmem:[%s354 + $0x3c] sm:$0xf]
        %v387 = vunpack.c.l.b16 %v355
        %v388 = vunpack.c.l.b16 %v356
        %v389 = vunpack.c.l.b16 %v357
        %v390 = vunpack.c.l.b16 %v358
        %v391 = vunpack.c.l.b16 %v359
        %v392 = vunpack.c.l.b16 %v360
        %v393 = vunpack.c.l.b16 %v361
        %v394 = vunpack.c.l.b16 %v362
        %v395 = vunpack.c.l.b16 %v363
        %v396 = vunpack.c.l.b16 %v364
        %v397 = vunpack.c.l.b16 %v365
        %v398 = vunpack.c.l.b16 %v366
        %v399 = vunpack.c.l.b16 %v367
        %v400 = vunpack.c.l.b16 %v368
        %v401 = vunpack.c.l.b16 %v369
        %v402 = vunpack.c.l.b16 %v370
        %v403 = vpack.c.b16 %v388, %v387
        %v404 = vpack.c.b16 %v390, %v389
        %v405 = vpack.c.b16 %v392, %v391
        %v406 = vpack.c.b16 %v394, %v393
        %v407 = vpack.c.b16 %v396, %v395
        %v408 = vpack.c.b16 %v398, %v397
        %v409 = vpack.c.b16 %v400, %v399
        %v410 = vpack.c.b16 %v402, %v401
        %419 = vmatprep.subr.bf16.mxu0 0
        %420 = vmatpush1.bf16.msra.mxu0 %v410
        %421 = vmatprep.subr.bf16.mxu0 0
        %422 = vmatpush1.bf16.msra.mxu0 %v409
        %423 = vmatprep.subr.bf16.mxu0 0
        %424 = vmatpush1.bf16.msra.mxu0 %v408
        %425 = vmatprep.subr.bf16.mxu0 0
        %426 = vmatpush1.bf16.msra.mxu0 %v407
        %427 = vmatprep.subr.bf16.mxu0 0
        %428 = vmatpush1.bf16.msra.mxu0 %v406
        %429 = vmatprep.subr.bf16.mxu0 0
        %430 = vmatpush1.bf16.msra.mxu0 %v405
        %431 = vmatprep.subr.bf16.mxu0 0
        %432 = vmatpush1.bf16.msra.mxu0 %v404
        %433 = vmatprep.subr.bf16.mxu0 0
        %434 = vmatpush1.bf16.msra.mxu0 %v403
        %435 = vmatprep.subr.bf16.mxu0 0
        %436 = vmatpush2.bf16.msra.mxu0 0
        %437 = vmatprep.subr.bf16.mxu0 0
        %438 = vmatpush2.bf16.msra.mxu0 0
        %439 = vmatprep.subr.bf16.mxu0 0
        %440 = vmatpush2.bf16.msra.mxu0 0
        %441 = vmatprep.subr.bf16.mxu0 0
        %442 = vmatpush2.bf16.msra.mxu0 0
        %443 = vmatprep.subr.bf16.mxu0 0
        %444 = vmatpush2.bf16.msra.mxu0 0
        %445 = vmatprep.subr.bf16.mxu0 0
        %446 = vmatpush2.bf16.msra.mxu0 0
        %447 = vmatprep.subr.bf16.mxu0 0
        %448 = vmatpush2.bf16.msra.mxu0 0
        %449 = vmatprep.subr.bf16.mxu0 0
        %450 = vmatpush2.bf16.msra.mxu0 0
        %451 = vmatprep.mubr.bf16.mxu0 0
        %452 = vmatmul.mubr.bf16.gmra.mxu0 %v247
        %v453 = vpop.f32.mrf.mxu0
        %v454 = vadd.f32 0.0, %v453
        %v455 = vpop.f32.mrf.mxu0
        %v456 = vpop.f32.mrf.mxu0
        %v457 = vpop.f32.mrf.mxu0
        %458 = vdwg.mxu0
        %v459 = vpack.c.bf16 %v454, %v454
        %s460 = scalar_lea.vmem [#allocation2], 4
        %461 = vst [vmem:[%s460] sm:$0xf] %v459
        %s462 = scalar_lea.vmem %s2, 128
        %v463 = vld [vmem:[%s462] sm:$0xf]
        %v464 = vld [vmem:[%s462 + $0x4] sm:$0xf]
        %v465 = vld [vmem:[%s462 + $0x8] sm:$0xf]
        %v466 = vld [vmem:[%s462 + $0xc] sm:$0xf]
        %v467 = vld [vmem:[%s462 + $0x10] sm:$0xf]
        %v468 = vld [vmem:[%s462 + $0x14] sm:$0xf]
        %v469 = vld [vmem:[%s462 + $0x18] sm:$0xf]
        %v470 = vld [vmem:[%s462 + $0x1c] sm:$0xf]
        %v471 = vld [vmem:[%s462 + $0x20] sm:$0xf]
        %v472 = vld [vmem:[%s462 + $0x24] sm:$0xf]
        %v473 = vld [vmem:[%s462 + $0x28] sm:$0xf]
        %v474 = vld [vmem:[%s462 + $0x2c] sm:$0xf]
        %v475 = vld [vmem:[%s462 + $0x30] sm:$0xf]
        %v476 = vld [vmem:[%s462 + $0x34] sm:$0xf]
        %v477 = vld [vmem:[%s462 + $0x38] sm:$0xf]
        %v478 = vld [vmem:[%s462 + $0x3c] sm:$0xf]
        %v495 = vunpack.c.l.b16 %v463
        %v496 = vunpack.c.l.b16 %v464
        %v497 = vunpack.c.l.b16 %v465
        %v498 = vunpack.c.l.b16 %v466
        %v499 = vunpack.c.l.b16 %v467
        %v500 = vunpack.c.l.b16 %v468
        %v501 = vunpack.c.l.b16 %v469
        %v502 = vunpack.c.l.b16 %v470
        %v503 = vunpack.c.l.b16 %v471
        %v504 = vunpack.c.l.b16 %v472
        %v505 = vunpack.c.l.b16 %v473
        %v506 = vunpack.c.l.b16 %v474
        %v507 = vunpack.c.l.b16 %v475
        %v508 = vunpack.c.l.b16 %v476
        %v509 = vunpack.c.l.b16 %v477
        %v510 = vunpack.c.l.b16 %v478
        %v511 = vpack.c.b16 %v496, %v495
        %v512 = vpack.c.b16 %v498, %v497
        %v513 = vpack.c.b16 %v500, %v499
        %v514 = vpack.c.b16 %v502, %v501
        %v515 = vpack.c.b16 %v504, %v503
        %v516 = vpack.c.b16 %v506, %v505
        %v517 = vpack.c.b16 %v508, %v507
        %v518 = vpack.c.b16 %v510, %v509
        %527 = vmatprep.subr.bf16.mxu0 0
        %528 = vmatpush1.bf16.msra.mxu0 %v518
        %529 = vmatprep.subr.bf16.mxu0 0
        %530 = vmatpush1.bf16.msra.mxu0 %v517
        %531 = vmatprep.subr.bf16.mxu0 0
        %532 = vmatpush1.bf16.msra.mxu0 %v516
        %533 = vmatprep.subr.bf16.mxu0 0
        %534 = vmatpush1.bf16.msra.mxu0 %v515
        %535 = vmatprep.subr.bf16.mxu0 0
        %536 = vmatpush1.bf16.msra.mxu0 %v514
        %537 = vmatprep.subr.bf16.mxu0 0
        %538 = vmatpush1.bf16.msra.mxu0 %v513
        %539 = vmatprep.subr.bf16.mxu0 0
        %540 = vmatpush1.bf16.msra.mxu0 %v512
        %541 = vmatprep.subr.bf16.mxu0 0
        %542 = vmatpush1.bf16.msra.mxu0 %v511
        %543 = vmatprep.subr.bf16.mxu0 0
        %544 = vmatpush2.bf16.msra.mxu0 0
        %545 = vmatprep.subr.bf16.mxu0 0
        %546 = vmatpush2.bf16.msra.mxu0 0
        %547 = vmatprep.subr.bf16.mxu0 0
        %548 = vmatpush2.bf16.msra.mxu0 0
        %549 = vmatprep.subr.bf16.mxu0 0
        %550 = vmatpush2.bf16.msra.mxu0 0
        %551 = vmatprep.subr.bf16.mxu0 0
        %552 = vmatpush2.bf16.msra.mxu0 0
        %553 = vmatprep.subr.bf16.mxu0 0
        %554 = vmatpush2.bf16.msra.mxu0 0
        %555 = vmatprep.subr.bf16.mxu0 0
        %556 = vmatpush2.bf16.msra.mxu0 0
        %557 = vmatprep.subr.bf16.mxu0 0
        %558 = vmatpush2.bf16.msra.mxu0 0
        %559 = vmatprep.mubr.bf16.mxu0 0
        %560 = vmatmul.mubr.bf16.gmra.mxu0 %v247
        %v561 = vpop.f32.mrf.mxu0
        %v562 = vadd.f32 0.0, %v561
        %v563 = vpop.f32.mrf.mxu0
        %v564 = vpop.f32.mrf.mxu0
        %v565 = vpop.f32.mrf.mxu0
        %566 = vdwg.mxu0
        %v567 = vpack.c.bf16 %v562, %v562
        %s568 = scalar_lea.vmem [#allocation2], 8
        %569 = vst [vmem:[%s568] sm:$0xf] %v567
        %s570 = scalar_lea.vmem %s2, 192
        %v571 = vld [vmem:[%s570] sm:$0xf]
        %v572 = vld [vmem:[%s570 + $0x4] sm:$0xf]
        %v573 = vld [vmem:[%s570 + $0x8] sm:$0xf]
        %v574 = vld [vmem:[%s570 + $0xc] sm:$0xf]
        %v575 = vld [vmem:[%s570 + $0x10] sm:$0xf]
        %v576 = vld [vmem:[%s570 + $0x14] sm:$0xf]
        %v577 = vld [vmem:[%s570 + $0x18] sm:$0xf]
        %v578 = vld [vmem:[%s570 + $0x1c] sm:$0xf]
        %v579 = vld [vmem:[%s570 + $0x20] sm:$0xf]
        %v580 = vld [vmem:[%s570 + $0x24] sm:$0xf]
        %v581 = vld [vmem:[%s570 + $0x28] sm:$0xf]
        %v582 = vld [vmem:[%s570 + $0x2c] sm:$0xf]
        %v583 = vld [vmem:[%s570 + $0x30] sm:$0xf]
        %v584 = vld [vmem:[%s570 + $0x34] sm:$0xf]
        %v585 = vld [vmem:[%s570 + $0x38] sm:$0xf]
        %v586 = vld [vmem:[%s570 + $0x3c] sm:$0xf]
        %v603 = vunpack.c.l.b16 %v571
        %v604 = vunpack.c.l.b16 %v572
        %v605 = vunpack.c.l.b16 %v573
        %v606 = vunpack.c.l.b16 %v574
        %v607 = vunpack.c.l.b16 %v575
        %v608 = vunpack.c.l.b16 %v576
        %v609 = vunpack.c.l.b16 %v577
        %v610 = vunpack.c.l.b16 %v578
        %v611 = vunpack.c.l.b16 %v579
        %v612 = vunpack.c.l.b16 %v580
        %v613 = vunpack.c.l.b16 %v581
        %v614 = vunpack.c.l.b16 %v582
        %v615 = vunpack.c.l.b16 %v583
        %v616 = vunpack.c.l.b16 %v584
        %v617 = vunpack.c.l.b16 %v585
        %v618 = vunpack.c.l.b16 %v586
        %v619 = vpack.c.b16 %v604, %v603
        %v620 = vpack.c.b16 %v606, %v605
        %v621 = vpack.c.b16 %v608, %v607
        %v622 = vpack.c.b16 %v610, %v609
        %v623 = vpack.c.b16 %v612, %v611
        %v624 = vpack.c.b16 %v614, %v613
        %v625 = vpack.c.b16 %v616, %v615
        %v626 = vpack.c.b16 %v618, %v617
        %635 = vmatprep.subr.bf16.mxu0 0
        %636 = vmatpush1.bf16.msra.mxu0 %v626
        %637 = vmatprep.subr.bf16.mxu0 0
        %638 = vmatpush1.bf16.msra.mxu0 %v625
        %639 = vmatprep.subr.bf16.mxu0 0
        %640 = vmatpush1.bf16.msra.mxu0 %v624
        %641 = vmatprep.subr.bf16.mxu0 0
        %642 = vmatpush1.bf16.msra.mxu0 %v623
        %643 = vmatprep.subr.bf16.mxu0 0
        %644 = vmatpush1.bf16.msra.mxu0 %v622
        %645 = vmatprep.subr.bf16.mxu0 0
        %646 = vmatpush1.bf16.msra.mxu0 %v621
        %647 = vmatprep.subr.bf16.mxu0 0
        %648 = vmatpush1.bf16.msra.mxu0 %v620
        %649 = vmatprep.subr.bf16.mxu0 0
        %650 = vmatpush1.bf16.msra.mxu0 %v619
        %651 = vmatprep.subr.bf16.mxu0 0
        %652 = vmatpush2.bf16.msra.mxu0 0
        %653 = vmatprep.subr.bf16.mxu0 0
        %654 = vmatpush2.bf16.msra.mxu0 0
        %655 = vmatprep.subr.bf16.mxu0 0
        %656 = vmatpush2.bf16.msra.mxu0 0
        %657 = vmatprep.subr.bf16.mxu0 0
        %658 = vmatpush2.bf16.msra.mxu0 0
        %659 = vmatprep.subr.bf16.mxu0 0
        %660 = vmatpush2.bf16.msra.mxu0 0
        %661 = vmatprep.subr.bf16.mxu0 0
        %662 = vmatpush2.bf16.msra.mxu0 0
        %663 = vmatprep.subr.bf16.mxu0 0
        %664 = vmatpush2.bf16.msra.mxu0 0
        %665 = vmatprep.subr.bf16.mxu0 0
        %666 = vmatpush2.bf16.msra.mxu0 0
        %667 = vmatprep.mubr.bf16.mxu0 0
        %668 = vmatmul.mubr.bf16.gmra.mxu0 %v247
        %v669 = vpop.f32.mrf.mxu0
        %v670 = vadd.f32 0.0, %v669
        %v671 = vpop.f32.mrf.mxu0
        %v672 = vpop.f32.mrf.mxu0
        %v673 = vpop.f32.mrf.mxu0
        %674 = vdwg.mxu0
        %v675 = vpack.c.bf16 %v670, %v670
        %s676 = scalar_lea.vmem [#allocation2], 12
        %677 = vst [vmem:[%s676] sm:$0xf] %v675
      $region36: #{biaffine_forward.1} parent=31 // pred_fallthru
        _
      %v678 = vld [vmem:[%s230] sm:$0xf]
      %v679 = vld [vmem:[#allocation2] sm:$0xf]
      %680 = vmatprep.subr.bf16.mxu0 0
      %681 = vmatpush1.bf16.xpose.msra.mxu0 0
      %682 = vmatprep.subr.bf16.mxu0 0
      %683 = vmatpush1.bf16.xpose.msra.mxu0 0
      %684 = vmatprep.subr.bf16.mxu0 0
      %685 = vmatpush1.bf16.xpose.msra.mxu0 0
      %686 = vmatprep.subr.bf16.mxu0 0
      %687 = vmatpush1.bf16.xpose.msra.mxu0 0
      %688 = vmatprep.subr.bf16.mxu0 0
      %689 = vmatpush1.bf16.xpose.msra.mxu0 0
      %690 = vmatprep.subr.bf16.mxu0 0
      %691 = vmatpush1.bf16.xpose.msra.mxu0 0
      %692 = vmatprep.subr.bf16.mxu0 0
      %693 = vmatpush1.bf16.xpose.msra.mxu0 0
      %694 = vmatprep.subr.bf16.mxu0 0
      %695 = vmatpush1.bf16.xpose.msra.mxu0 %v678
      %696 = vmatprep.subr.bf16.mxu0 0
      %697 = vmatpush2.bf16.xpose.msra.mxu0 0
      %698 = vmatprep.subr.bf16.mxu0 0
      %699 = vmatpush2.bf16.xpose.msra.mxu0 0
      %700 = vmatprep.subr.bf16.mxu0 0
      %701 = vmatpush2.bf16.xpose.msra.mxu0 0
      %702 = vmatprep.subr.bf16.mxu0 0
      %703 = vmatpush2.bf16.xpose.msra.mxu0 0
      %704 = vmatprep.subr.bf16.mxu0 0
      %705 = vmatpush2.bf16.xpose.msra.mxu0 0
      %706 = vmatprep.subr.bf16.mxu0 0
      %707 = vmatpush2.bf16.xpose.msra.mxu0 0
      %708 = vmatprep.subr.bf16.mxu0 0
      %709 = vmatpush2.bf16.xpose.msra.mxu0 0
      %710 = vmatprep.subr.bf16.mxu0 0
      %711 = vmatpush2.bf16.xpose.msra.mxu0 0
      %712 = vmatprep.mubr.bf16.mxu0 0
      %713 = vmatmul.mubr.bf16.gmra.mxu0 %v679
      %v714 = vpop.f32.mrf.mxu0
      %v715 = vadd.f32 0.0, %v714
      %v716 = vpop.f32.mrf.mxu0
      %v717 = vpop.f32.mrf.mxu0
      %v718 = vpop.f32.mrf.mxu0
      %719 = vdwg.mxu0
      %vm720 = vcmask 64512
      %721 = vst.msk [vmem:[%s241] sm:$0xff] %vm720, %v715
      %s722 = scalar_lea.vmem [#allocation2], 4
      %v723 = vld [vmem:[%s722] sm:$0xf]
      %724 = vmatprep.subr.bf16.mxu0 0
      %725 = vmatpush1.bf16.xpose.msra.mxu0 0
      %726 = vmatprep.subr.bf16.mxu0 0
      %727 = vmatpush1.bf16.xpose.msra.mxu0 0
      %728 = vmatprep.subr.bf16.mxu0 0
      %729 = vmatpush1.bf16.xpose.msra.mxu0 0
      %730 = vmatprep.subr.bf16.mxu0 0
      %731 = vmatpush1.bf16.xpose.msra.mxu0 0
      %732 = vmatprep.subr.bf16.mxu0 0
      %733 = vmatpush1.bf16.xpose.msra.mxu0 0
      %734 = vmatprep.subr.bf16.mxu0 0
      %735 = vmatpush1.bf16.xpose.msra.mxu0 0
      %736 = vmatprep.subr.bf16.mxu0 0
      %737 = vmatpush1.bf16.xpose.msra.mxu0 0
      %738 = vmatprep.subr.bf16.mxu0 0
      %739 = vmatpush1.bf16.xpose.msra.mxu0 %v678
      %740 = vmatprep.subr.bf16.mxu0 0
      %741 = vmatpush2.bf16.xpose.msra.mxu0 0
      %742 = vmatprep.subr.bf16.mxu0 0
      %743 = vmatpush2.bf16.xpose.msra.mxu0 0
      %744 = vmatprep.subr.bf16.mxu0 0
      %745 = vmatpush2.bf16.xpose.msra.mxu0 0
      %746 = vmatprep.subr.bf16.mxu0 0
      %747 = vmatpush2.bf16.xpose.msra.mxu0 0
      %748 = vmatprep.subr.bf16.mxu0 0
      %749 = vmatpush2.bf16.xpose.msra.mxu0 0
      %750 = vmatprep.subr.bf16.mxu0 0
      %751 = vmatpush2.bf16.xpose.msra.mxu0 0
      %752 = vmatprep.subr.bf16.mxu0 0
      %753 = vmatpush2.bf16.xpose.msra.mxu0 0
      %754 = vmatprep.subr.bf16.mxu0 0
      %755 = vmatpush2.bf16.xpose.msra.mxu0 0
      %756 = vmatprep.mubr.bf16.mxu0 0
      %757 = vmatmul.mubr.bf16.gmra.mxu0 %v723
      %v758 = vpop.f32.mrf.mxu0
      %v759 = vadd.f32 0.0, %v758
      %v760 = vpop.f32.mrf.mxu0
      %v761 = vpop.f32.mrf.mxu0
      %v762 = vpop.f32.mrf.mxu0
      %763 = vdwg.mxu0
      %s764 = scalar_lea.vmem %s241, 8
      %765 = vst.msk [vmem:[%s764] sm:$0xff] %vm720, %v759
      %s766 = scalar_lea.vmem [#allocation2], 8
      %v767 = vld [vmem:[%s766] sm:$0xf]
      %768 = vmatprep.subr.bf16.mxu0 0
      %769 = vmatpush1.bf16.xpose.msra.mxu0 0
      %770 = vmatprep.subr.bf16.mxu0 0
      %771 = vmatpush1.bf16.xpose.msra.mxu0 0
      %772 = vmatprep.subr.bf16.mxu0 0
      %773 = vmatpush1.bf16.xpose.msra.mxu0 0
      %774 = vmatprep.subr.bf16.mxu0 0
      %775 = vmatpush1.bf16.xpose.msra.mxu0 0
      %776 = vmatprep.subr.bf16.mxu0 0
      %777 = vmatpush1.bf16.xpose.msra.mxu0 0
      %778 = vmatprep.subr.bf16.mxu0 0
      %779 = vmatpush1.bf16.xpose.msra.mxu0 0
      %780 = vmatprep.subr.bf16.mxu0 0
      %781 = vmatpush1.bf16.xpose.msra.mxu0 0
      %782 = vmatprep.subr.bf16.mxu0 0
      %783 = vmatpush1.bf16.xpose.msra.mxu0 %v678
      %784 = vmatprep.subr.bf16.mxu0 0
      %785 = vmatpush2.bf16.xpose.msra.mxu0 0
      %786 = vmatprep.subr.bf16.mxu0 0
      %787 = vmatpush2.bf16.xpose.msra.mxu0 0
      %788 = vmatprep.subr.bf16.mxu0 0
      %789 = vmatpush2.bf16.xpose.msra.mxu0 0
      %790 = vmatprep.subr.bf16.mxu0 0
      %791 = vmatpush2.bf16.xpose.msra.mxu0 0
      %792 = vmatprep.subr.bf16.mxu0 0
      %793 = vmatpush2.bf16.xpose.msra.mxu0 0
      %794 = vmatprep.subr.bf16.mxu0 0
      %795 = vmatpush2.bf16.xpose.msra.mxu0 0
      %796 = vmatprep.subr.bf16.mxu0 0
      %797 = vmatpush2.bf16.xpose.msra.mxu0 0
      %798 = vmatprep.subr.bf16.mxu0 0
      %799 = vmatpush2.bf16.xpose.msra.mxu0 0
      %800 = vmatprep.mubr.bf16.mxu0 0
      %801 = vmatmul.mubr.bf16.gmra.mxu0 %v767
      %v802 = vpop.f32.mrf.mxu0
      %v803 = vadd.f32 0.0, %v802
      %v804 = vpop.f32.mrf.mxu0
      %v805 = vpop.f32.mrf.mxu0
      %v806 = vpop.f32.mrf.mxu0
      %807 = vdwg.mxu0
      %s808 = scalar_lea.vmem %s241, 16
      %809 = vst.msk [vmem:[%s808] sm:$0xff] %vm720, %v803
      %s810 = scalar_lea.vmem [#allocation2], 12
      %v811 = vld [vmem:[%s810] sm:$0xf]
      %812 = vmatprep.subr.bf16.mxu0 0
      %813 = vmatpush1.bf16.xpose.msra.mxu0 0
      %814 = vmatprep.subr.bf16.mxu0 0
      %815 = vmatpush1.bf16.xpose.msra.mxu0 0
      %816 = vmatprep.subr.bf16.mxu0 0
      %817 = vmatpush1.bf16.xpose.msra.mxu0 0
      %818 = vmatprep.subr.bf16.mxu0 0
      %819 = vmatpush1.bf16.xpose.msra.mxu0 0
      %820 = vmatprep.subr.bf16.mxu0 0
      %821 = vmatpush1.bf16.xpose.msra.mxu0 0
      %822 = vmatprep.subr.bf16.mxu0 0
      %823 = vmatpush1.bf16.xpose.msra.mxu0 0
      %824 = vmatprep.subr.bf16.mxu0 0
      %825 = vmatpush1.bf16.xpose.msra.mxu0 0
      %826 = vmatprep.subr.bf16.mxu0 0
      %827 = vmatpush1.bf16.xpose.msra.mxu0 %v678
      %828 = vmatprep.subr.bf16.mxu0 0
      %829 = vmatpush2.bf16.xpose.msra.mxu0 0
      %830 = vmatprep.subr.bf16.mxu0 0
      %831 = vmatpush2.bf16.xpose.msra.mxu0 0
      %832 = vmatprep.subr.bf16.mxu0 0
      %833 = vmatpush2.bf16.xpose.msra.mxu0 0
      %834 = vmatprep.subr.bf16.mxu0 0
      %835 = vmatpush2.bf16.xpose.msra.mxu0 0
      %836 = vmatprep.subr.bf16.mxu0 0
      %837 = vmatpush2.bf16.xpose.msra.mxu0 0
      %838 = vmatprep.subr.bf16.mxu0 0
      %839 = vmatpush2.bf16.xpose.msra.mxu0 0
      %840 = vmatprep.subr.bf16.mxu0 0
      %841 = vmatpush2.bf16.xpose.msra.mxu0 0
      %842 = vmatprep.subr.bf16.mxu0 0
      %843 = vmatpush2.bf16.xpose.msra.mxu0 0
      %844 = vmatprep.mubr.bf16.mxu0 0
      %845 = vmatmul.mubr.bf16.gmra.mxu0 %v811
      %v846 = vpop.f32.mrf.mxu0
      %v847 = vadd.f32 0.0, %v846
      %v848 = vpop.f32.mrf.mxu0
      %v849 = vpop.f32.mrf.mxu0
      %v850 = vpop.f32.mrf.mxu0
      %851 = vdwg.mxu0
      %s852 = scalar_lea.vmem %s241, 24
      %853 = vst.msk [vmem:[%s852] sm:$0xff] %vm720, %v847
      %p854 = scmp.lt.s32.totalorder %s19, 1
      %s855 = scalar_select %p854, %s19, 1
      %p856 = scmp.lt.s32.totalorder %s20, 0
      %s857 = scalar_select %p856, %s20, 0
      %p858 = scmp.lt.s32.totalorder %s21, 0
      %s859 = scalar_select %p858, %s21, 0
      %s860 = sadd.s32 %s859, %s857
      %s861 = smul.addr %s855, 4
      %s862 = sadd.s32 %s860, %s861
      %s863 = smul.addr %s862, 8
      %s864 = scalar_lea.vmem %s3, %s863
      // Predicated region
      $region37: #{biaffine_forward.1} parent=31 // pred_check
        %p865 = pneg %p132
      $region38: #{biaffine_forward.1} parent=31 // pred_check_branch
        %867 = sbr.rel (%p865) target = $region40
      $region39: #{biaffine_forward.1} parent=31 // pred_region
        _
      $region40: #{biaffine_forward.1} parent=31 // pred_fallthru
        _
    $region32: #{biaffine_forward.1} parent=5 // pred_fallthru
      _
    %p868 = scmp.le.s32.totalorder 2, %s9
    // Predicated region
    $region41: #{biaffine_forward.1} parent=5 // pred_check
      %p869 = pneg %p868
    $region42: #{biaffine_forward.1} parent=5 // pred_check_branch
      %871 = sbr.rel (%p869) target = $region44
    $region43: #{biaffine_forward.1} parent=5 // pred_region
      %s872 = ssub.s32 %s9, 2
      // Predicated region
      $region45: #{biaffine_forward.1} parent=43 // pred_check
        %p873 = pneg %p138
      $region46: #{biaffine_forward.1} parent=43 // pred_check_branch
        %875 = sbr.rel (%p873) target = $region48
      $region47: #{biaffine_forward.1} parent=43 // pred_region
        %p876 = scmp.lt.s32.totalorder %s22, 1
        %s877 = scalar_select %p876, %s22, 1
        %p878 = scmp.lt.s32.totalorder %s23, 0
        %s879 = scalar_select %p878, %s23, 0
        %p880 = scmp.lt.s32.totalorder %s24, 0
        %s881 = scalar_select %p880, %s24, 0
        %s882 = sadd.s32 %s881, %s879
        %s883 = smul.addr %s877, 4
        %s884 = sadd.s32 %s882, %s883
        %s885 = smul.addr %s884, 8
        %s886 = scalar_lea.vmem %s3, %s885
      $region48: #{biaffine_forward.1} parent=43 // pred_fallthru
        _
    $region44: #{biaffine_forward.1} parent=5 // pred_fallthru
      _
  $region6: #{biaffine_forward.1} parent=0 // loop_footer
    %s13 = sadd.s32 1, %s9
  $region7: #{biaffine_forward.1} parent=0 // loop_footer_branch
    %8 = sbr.rel target = $region3
  $region8: #{biaffine_forward.1} parent=0 // loop_exit
    _

</llo_original>
